<compile_context>
chip_gen: v7x
topology: tpu7x:2x2x1
jax: 0.10.0
libtpu: 0.0.40
codegen_flags: <defaults>
</compile_context>

<pallas_src>
import functools

import jax
import jax.numpy as jnp
from jax.experimental import pallas as pl
from jax.experimental.pallas import tpu as pltpu


# ------------------------------- kernels -----------------------------------

def _fused_gam_kernel(fs_ref, mask_ref, w1_ref, b1_ref, w2_ref, b2_ref,
                      out_ref, *, inv_hw):
    """Single fused pass over one batch tile.

    fs_ref:   (bt, C, HW)  Fs tile, source dtype (f32 or bf16)
    mask_ref: (bt, 1, HW)  nearest-upsampled mask tile
    w1/w2:    (C, C)       1x1-conv weights pre-transposed to (in, out), f32
    b1/b2:    (1, C)       f32
    """
    fs = fs_ref[...]                                   # source dtype, single load
    m = mask_ref[...].astype(fs.dtype)                 # (bt, 1, HW)

    # adaptive_avg_pool2d(mask*Fs, 1)  ==  (Fs . mask) / HW
    # Batched MXU contraction with f32 accumulation -> no (bt,C,HW) f32 temp.
    att = jnp.einsum('bqh,bch->bqc', m, fs,
                     preferred_element_type=jnp.float32)[:, 0, :] * inv_hw  # (bt, C)

    # gate: conv1x1 -> ReLU -> conv1x1 -> (dropout = identity, eval) -> sigmoid
    h1 = jnp.dot(att, w1_ref[...], preferred_element_type=jnp.float32) + b1_ref[...]
    h1 = jnp.maximum(h1, 0.0)
    g = jax.nn.sigmoid(
        jnp.dot(h1, w2_ref[...], preferred_element_type=jnp.float32) + b2_ref[...])

    # Apply the gate in the *source* dtype (bf16 stays bf16 -> half the VPU work).
    out_ref[...] = (fs * g.astype(fs.dtype)[:, :, None]).astype(out_ref.dtype)


def _pool_gate_kernel(fs_ref, mask_ref, w1_ref, b1_ref, w2_ref, b2_ref,
                      g_ref, acc_ref, *, inv_hw):
    """HW-tiled pooling + gate.  grid = (nb, n_hw); acc_ref persists across hw."""
    hw_i = pl.program_id(1)

    @pl.when(hw_i == 0)
    def _():
        acc_ref[...] = jnp.zeros_like(acc_ref)

    fs = fs_ref[...]
    m = mask_ref[...].astype(fs.dtype)
    acc_ref[...] += jnp.einsum('bqh,bch->bqc', m, fs,
                               preferred_element_type=jnp.float32)[:, 0, :]

    @pl.when(hw_i == pl.num_programs(1) - 1)
    def _():
        att = acc_ref[...] * inv_hw
        h1 = jnp.maximum(
            jnp.dot(att, w1_ref[...], preferred_element_type=jnp.float32) + b1_ref[...],
            0.0)
        g = jax.nn.sigmoid(
            jnp.dot(h1, w2_ref[...], preferred_element_type=jnp.float32) + b2_ref[...])
        g_ref[...] = g[:, :, None]                     # (bt, C, 1) f32


def _apply_gate_kernel(fs_ref, g_ref, out_ref):
    """Second pass of the fallback: out = g * Fs on an HW tile."""
    fs = fs_ref[...]
    out_ref[...] = (fs * g_ref[...].astype(fs.dtype)).astype(out_ref.dtype)


# ------------------------------ wrapper -------------------------------------

def _divisors(n):
    return [d for d in range(1, n + 1) if n % d == 0]


def _usable_vmem_bytes():
    """Per-generation usable VMEM (leave ~25% headroom for compiler scratch):
    128 MiB chips (v5e/v6e) -> ~96 MiB, 64 MiB (v7x) -> ~48 MiB."""
    try:
        cap = int(pltpu.get_tpu_info().vmem_capacity_bytes)
    except Exception:
        cap = 64 << 20                                # conservative default
    return max(16 << 20, (cap * 3) // 4)


def _pick_batch_tile(B, per_batch_bytes, budget_bytes):
    """Largest divisor of B that fits the budget, preferring >= 4 grid steps
    (>= 2 per TensorCore on a 2-TC chip), then >= 2, then any.  None if even
    a single batch element does not fit (caller falls back to HW tiling)."""
    fits = [d for d in _divisors(B) if d * per_batch_bytes <= budget_bytes]
    if not fits:
        return None
    for min_steps in (4, 2, 1):
        cands = [d for d in fits if B // d >= min_steps]
        if cands:
            return max(cands)
    return max(fits)


def attention_forward(Fs, Ys, w1, b1, w2, b2, *, block_budget_bytes=None):
    """GAM forward (eval mode).

    Fs: (B, C, H, W) float (f32 or bf16).  Ys: (B, 1, Hm, Wm) float mask.
    w1, w2: (C, C, 1, 1) conv weights (out, in, 1, 1).  b1, b2: (C,).
    block_budget_bytes: optional override of the streaming-buffer VMEM budget
    (used mainly to force/test the HW-tiling fallback).
    """
    B, C, H, W = Fs.shape
    Hm, Wm = Ys.shape[-2:]
    HW = H * W

    # Nearest-neighbor upsample of the support mask to (H, W).
    # Matches F.interpolate(mode='nearest'): src_idx = floor(dst_idx*in/out).
    if H % Hm == 0 and W % Wm == 0:
        mask_up = jnp.repeat(jnp.repeat(Ys, H // Hm, axis=2), W // Wm, axis=3)
    else:
        idx_h = (jnp.arange(H) * Hm) // H
        idx_w = (jnp.arange(W) * Wm) // W
        mask_up = Ys[:, :, idx_h, :][:, :, :, idx_w]

    # Keep source dtypes in HBM (bf16 stays bf16 -> half the streaming traffic).
    fs_flat = Fs.reshape(B, C, HW)
    mask_flat = mask_up.reshape(B, 1, HW)

    # conv1x1 weight (out, in, 1, 1) -> (in, out) so the kernel computes att @ W.
    w1t = w1.reshape(C, C).T.astype(jnp.float32)
    w2t = w2.reshape(C, C).T.astype(jnp.float32)
    b1r = b1.reshape(1, C).astype(jnp.float32)
    b2r = b2.reshape(1, C).astype(jnp.float32)

    fs_item = jnp.dtype(fs_flat.dtype).itemsize
    m_item = jnp.dtype(mask_flat.dtype).itemsize

    weight_bytes = 2 * (2 * C * C + 2 * C) * 4        # double-buffered weights/biases
    headroom = 4 << 20

    usable = _usable_vmem_bytes()
    budget = max(1 << 20, usable - weight_bytes - headroom)
    if block_budget_bytes is not None:
        budget = min(budget, int(block_budget_bytes))

    def per_batch_bytes(hw_tile):
        # double-buffered Fs in + out (source dtype) + sublane-padded mask tile
        return 2 * (2 * C * hw_tile * fs_item + 8 * hw_tile * m_item)

    cost = pl.CostEstimate(
        flops=int(3 * B * C * HW + 4 * B * C * C),
        transcendentals=int(B * C),
        bytes_accessed=int(2 * B * C * HW * fs_item + B * HW * m_item),
    )

    bt = _pick_batch_tile(B, per_batch_bytes(HW), budget)

    if bt is not None:
        # ---------------- single fused pass over Fs (common case) ------------
        nb = B // bt
        vmem_limit = int(min(usable, max(16 << 20,
                                         per_batch_bytes(HW) * bt
                                         + weight_bytes + headroom)))
        out_flat = pl.pallas_call(
            functools.partial(_fused_gam_kernel, inv_hw=1.0 / float(HW)),
            out_shape=jax.ShapeDtypeStruct((B, C, HW), Fs.dtype),
            grid=(nb,),
            in_specs=[
                pl.BlockSpec((bt, C, HW), lambda b: (b, 0, 0)),
                pl.BlockSpec((bt, 1, HW), lambda b: (b, 0, 0)),
                pl.BlockSpec((C, C), lambda b: (0, 0)),
                pl.BlockSpec((1, C), lambda b: (0, 0)),
                pl.BlockSpec((C, C), lambda b: (0, 0)),
                pl.BlockSpec((1, C), lambda b: (0, 0)),
            ],
            out_specs=pl.BlockSpec((bt, C, HW), lambda b: (b, 0, 0)),
            compiler_params=pltpu.CompilerParams(
                dimension_semantics=("parallel",),
                vmem_limit_bytes=vmem_limit,
            ),
            cost_estimate=cost,
        )(fs_flat, mask_flat, w1t, b1r, w2t, b2r)
        return out_flat.reshape(B, C, H, W)

    # ----------- HW-tiling fallback: a single (C, HW) slab is too big --------
    # Pass 1: accumulate the pooled attention over lane-dense HW tiles and
    #         compute the per-channel gate on the last HW step.
    # Pass 2: gated copy of Fs (reads Fs a second time; only used when one
    #         batch element cannot fit VMEM).
    hw_divs = [d for d in _divisors(HW) if d % 128 == 0] or _divisors(HW)
    t_hw = None
    for d in sorted(hw_divs, reverse=True):
        if per_batch_bytes(d) <= budget:
            t_hw = d
            break
    if t_hw is None:
        t_hw = min(hw_divs)                           # best effort
    bt = 1
    nb = B
    n_hw = HW // t_hw
    vmem_limit = int(min(usable, max(16 << 20,
                                     per_batch_bytes(t_hw) + weight_bytes + headroom)))

    g = pl.pallas_call(
        functools.partial(_pool_gate_kernel, inv_hw=1.0 / float(HW)),
        out_shape=jax.ShapeDtypeStruct((B, C, 1), jnp.float32),
        grid=(nb, n_hw),
        in_specs=[
            pl.BlockSpec((bt, C, t_hw), lambda b, h: (b, 0, h)),
            pl.BlockSpec((bt, 1, t_hw), lambda b, h: (b, 0, h)),
            pl.BlockSpec((C, C), lambda b, h: (0, 0)),
            pl.BlockSpec((1, C), lambda b, h: (0, 0)),
            pl.BlockSpec((C, C), lambda b, h: (0, 0)),
            pl.BlockSpec((1, C), lambda b, h: (0, 0)),
        ],
        out_specs=pl.BlockSpec((bt, C, 1), lambda b, h: (b, 0, 0)),
        scratch_shapes=[pltpu.VMEM((bt, C), jnp.float32)],
        compiler_params=pltpu.CompilerParams(
            dimension_semantics=("parallel", "arbitrary"),
            vmem_limit_bytes=vmem_limit,
        ),
    )(fs_flat, mask_flat, w1t, b1r, w2t, b2r)

    out_flat = pl.pallas_call(
        _apply_gate_kernel,
        out_shape=jax.ShapeDtypeStruct((B, C, HW), Fs.dtype),
        grid=(nb, n_hw),
        in_specs=[
            pl.BlockSpec((bt, C, t_hw), lambda b, h: (b, 0, h)),
            pl.BlockSpec((bt, C, 1), lambda b, h: (b, 0, 0)),
        ],
        out_specs=pl.BlockSpec((bt, C, t_hw), lambda b, h: (b, 0, h)),
        compiler_params=pltpu.CompilerParams(
            dimension_semantics=("parallel", "parallel"),
            vmem_limit_bytes=vmem_limit,
        ),
        cost_estimate=cost,
    )(fs_flat, g)
    return out_flat.reshape(B, C, H, W)


# ------------------------------ reference -----------------------------------

def _reference_forward(Fs, Ys, w1, b1, w2, b2):
    """Pure-JAX reference mirroring the PyTorch module (eval mode), in f32."""
    B, C, H, W = Fs.shape
    Hm, Wm = Ys.shape[-2:]
    idx_h = (jnp.arange(H) * Hm) // H
    idx_w = (jnp.arange(W) * Wm) // W
    mask_up = Ys[:, :, idx_h, :][:, :, :, idx_w].astype(jnp.float32)
    Fs32 = Fs.astype(jnp.float32)
    att = jnp.mean(mask_up * Fs32, axis=(2, 3))                     # (B, C)
    h1 = jnp.maximum(att @ w1.reshape(C, C).T + b1[None, :], 0.0)
    g = jax.nn.sigmoid(h1 @ w2.reshape(C, C).T + b2[None, :])       # (B, C)
    return g[:, :, None, None] * Fs32


if __name__ == "__main__":
    key = jax.random.PRNGKey(0)
    k_fs, k_ys, k_w1, k_b1, k_w2, k_b2 = jax.random.split(key, 6)

    B, C, H, W = 2, 32, 16, 16        # Fs: query feature map (NCHW)
    Hm, Wm = 8, 8                     # Ys: support mask, lower resolution

    Fs = jax.random.normal(k_fs, (B, C, H, W), dtype=jnp.float32)
    Ys = (jax.random.uniform(k_ys, (B, 1, Hm, Wm)) > 0.5).astype(jnp.float32)

    # deterministic synthetic parameters (conv1x1 weights: (out, in, 1, 1))
    w1 = 0.1 * jax.random.normal(k_w1, (C, C, 1, 1), dtype=jnp.float32)
    b1 = 0.1 * jax.random.normal(k_b1, (C,), dtype=jnp.float32)
    w2 = 0.1 * jax.random.normal(k_w2, (C, C, 1, 1), dtype=jnp.float32)
    b2 = 0.1 * jax.random.normal(k_b2, (C,), dtype=jnp.float32)

    ref = _reference_forward(Fs, Ys, w1, b1, w2, b2)

    # ---- fused single-pass path, f32 ----
    out = jax.block_until_ready(attention_forward(Fs, Ys, w1, b1, w2, b2))
    assert out.shape == Fs.shape and out.dtype == Fs.dtype
    assert jnp.allclose(out, ref, atol=1e-5, rtol=1e-5), "f32 mismatch vs reference"

    # ---- bf16 passthrough path (streaming data stays bf16 end-to-end) ----
    Fs_bf16 = Fs.astype(jnp.bfloat16)
    ref_bf16 = _reference_forward(Fs_bf16, Ys, w1, b1, w2, b2)
    out_bf16 = jax.block_until_ready(attention_forward(Fs_bf16, Ys, w1, b1, w2, b2))
    assert out_bf16.dtype == jnp.bfloat16
    assert jnp.allclose(out_bf16.astype(jnp.float32), ref_bf16, atol=2e-2, rtol=2e-2), \
        "bf16 mismatch vs reference"

    # ---- force the HW-tiled fallback (as used when one (C,HW) slab > VMEM) ----
    out_tiled = jax.block_until_ready(
        attention_forward(Fs, Ys, w1, b1, w2, b2, block_budget_bytes=1 << 14))
    assert jnp.allclose(out_tiled, ref, atol=1e-5, rtol=1e-5), \
        "HW-tiled fallback mismatch vs reference"

    print("KERNEL_OK")
</pallas_src>

<mosaic_0001>
module attributes {stable_mosaic.version = 11 : i64} {
  func.func @_fused_gam_kernel(%arg0: i32, %arg1: memref<1x32x256xf32, #tpu.memory_space<vmem>>, %arg2: memref<1x1x256xf32, #tpu.memory_space<vmem>>, %arg3: memref<32x32xf32, #tpu.memory_space<vmem>>, %arg4: memref<1x32xf32, #tpu.memory_space<vmem>>, %arg5: memref<32x32xf32, #tpu.memory_space<vmem>>, %arg6: memref<1x32xf32, #tpu.memory_space<vmem>>, %arg7: memref<1x32x256xf32, #tpu.memory_space<vmem>>) attributes {dimension_semantics = [#tpu.dimension_semantics<parallel>], iteration_bounds = array<i64: 2>, scalar_prefetch = 0 : i64, scratch_operands = 0 : i64, tpu.core_type = #tpu.core_type<tc>, window_params = [{transform_indices = @transform_0, window_bounds = array<i64: 1, 32, 256>}, {transform_indices = @transform_1, window_bounds = array<i64: 1, 1, 256>}, {pipeline_mode = #tpu.pipeline_mode<synchronous>, transform_indices = @transform_2, window_bounds = array<i64: 32, 32>}, {pipeline_mode = #tpu.pipeline_mode<synchronous>, transform_indices = @transform_3, window_bounds = array<i64: 1, 32>}, {pipeline_mode = #tpu.pipeline_mode<synchronous>, transform_indices = @transform_4, window_bounds = array<i64: 32, 32>}, {pipeline_mode = #tpu.pipeline_mode<synchronous>, transform_indices = @transform_5, window_bounds = array<i64: 1, 32>}, {transform_indices = @transform_6, window_bounds = array<i64: 1, 32, 256>}]} {
    %c0 = arith.constant 0 : index
    %c0_0 = arith.constant 0 : index
    %c0_1 = arith.constant 0 : index
    %0 = vector.load %arg1[%c0, %c0_0, %c0_1] : memref<1x32x256xf32, #tpu.memory_space<vmem>>, vector<1x32x256xf32>
    %c0_2 = arith.constant 0 : index
    %c0_3 = arith.constant 0 : index
    %c0_4 = arith.constant 0 : index
    %1 = vector.load %arg2[%c0_2, %c0_3, %c0_4] : memref<1x1x256xf32, #tpu.memory_space<vmem>>, vector<1x1x256xf32>
    "tpu.trace_start"() <{level = 10 : i32, message = "bqh,bch->bqc"}> : () -> ()
    %cst = arith.constant dense<0.000000e+00> : vector<1x1x32xf32>
    %2 = tpu.matmul %1, %0, %cst {dimension_numbers = #tpu.dot_dimension_numbers<[2], [2], [1], [1], [0, 0, 0, 1, 1, 1], [0], [0]>} : vector<1x1x256xf32>, vector<1x32x256xf32>, vector<1x1x32xf32> -> vector<1x1x32xf32>
    "tpu.trace_stop"() : () -> ()
    %3 = vector.shape_cast %2 : vector<1x1x32xf32> to vector<1x32xf32>
    %cst_5 = arith.constant 3.906250e-03 : f32
    %4 = vector.broadcast %cst_5 : f32 to vector<1x32xf32>
    %5 = arith.mulf %3, %4 : vector<1x32xf32>
    %c0_6 = arith.constant 0 : index
    %c0_7 = arith.constant 0 : index
    %6 = vector.load %arg3[%c0_6, %c0_7] : memref<32x32xf32, #tpu.memory_space<vmem>>, vector<32x32xf32>
    %cst_8 = arith.constant dense<0.000000e+00> : vector<1x32xf32>
    %7 = tpu.matmul %5, %6, %cst_8 {dimension_numbers = #tpu.dot_dimension_numbers<[1], [0], [0], [1], [0, 0, 1, 1], [], []>} : vector<1x32xf32>, vector<32x32xf32>, vector<1x32xf32> -> vector<1x32xf32>
    %c0_9 = arith.constant 0 : index
    %c0_10 = arith.constant 0 : index
    %8 = vector.load %arg4[%c0_9, %c0_10] : memref<1x32xf32, #tpu.memory_space<vmem>>, vector<1x32xf32>
    %9 = arith.addf %7, %8 : vector<1x32xf32>
    %cst_11 = arith.constant 0.000000e+00 : f32
    %10 = vector.broadcast %cst_11 : f32 to vector<1x32xf32>
    %11 = arith.maximumf %9, %10 : vector<1x32xf32>
    %c0_12 = arith.constant 0 : index
    %c0_13 = arith.constant 0 : index
    %12 = vector.load %arg5[%c0_12, %c0_13] : memref<32x32xf32, #tpu.memory_space<vmem>>, vector<32x32xf32>
    %cst_14 = arith.constant dense<0.000000e+00> : vector<1x32xf32>
    %13 = tpu.matmul %11, %12, %cst_14 {dimension_numbers = #tpu.dot_dimension_numbers<[1], [0], [0], [1], [0, 0, 1, 1], [], []>} : vector<1x32xf32>, vector<32x32xf32>, vector<1x32xf32> -> vector<1x32xf32>
    %c0_15 = arith.constant 0 : index
    %c0_16 = arith.constant 0 : index
    %14 = vector.load %arg6[%c0_15, %c0_16] : memref<1x32xf32, #tpu.memory_space<vmem>>, vector<1x32xf32>
    %15 = arith.addf %13, %14 : vector<1x32xf32>
    %16 = arith.negf %15 : vector<1x32xf32>
    %17 = math.exp %16 : vector<1x32xf32>
    %cst_17 = arith.constant 1.000000e+00 : f32
    %18 = vector.broadcast %cst_17 : f32 to vector<1x32xf32>
    %19 = arith.addf %18, %17 : vector<1x32xf32>
    %20 = arith.divf %18, %19 : vector<1x32xf32>
    %21 = vector.shape_cast %20 : vector<1x32xf32> to vector<1x32x1xf32>
    %22 = vector.broadcast %21 : vector<1x32x1xf32> to vector<1x32x256xf32>
    %23 = arith.mulf %0, %22 : vector<1x32x256xf32>
    %c0_18 = arith.constant 0 : index
    %c0_19 = arith.constant 0 : index
    %c0_20 = arith.constant 0 : index
    %24 = vector.load %arg7[%c0_18, %c0_19, %c0_20] : memref<1x32x256xf32, #tpu.memory_space<vmem>>, vector<1x32x256xf32>
    tpu.vector_store %arg7[%c0_18, %c0_19, %c0_20], %23 {strides = array<i32>} : memref<1x32x256xf32, #tpu.memory_space<vmem>>, vector<1x32x256xf32>,
    return
  }
  func.func @transform_0(%arg0: i32) -> (i32, i32, i32) {
    %c0_i32 = arith.constant 0 : i32
    %c0_i32_0 = arith.constant 0 : i32
    %c0_i32_1 = arith.constant 0 : i32
    return %arg0, %c0_i32, %c0_i32_0 : i32, i32, i32
  }
  func.func @transform_1(%arg0: i32) -> (i32, i32, i32) {
    %c0_i32 = arith.constant 0 : i32
    %c0_i32_0 = arith.constant 0 : i32
    %c0_i32_1 = arith.constant 0 : i32
    return %arg0, %c0_i32, %c0_i32_0 : i32, i32, i32
  }
  func.func @transform_2(%arg0: i32) -> (i32, i32) {
    %c0_i32 = arith.constant 0 : i32
    %c0_i32_0 = arith.constant 0 : i32
    %c0_i32_1 = arith.constant 0 : i32
    return %c0_i32, %c0_i32_0 : i32, i32
  }
  func.func @transform_3(%arg0: i32) -> (i32, i32) {
    %c0_i32 = arith.constant 0 : i32
    %c0_i32_0 = arith.constant 0 : i32
    %c0_i32_1 = arith.constant 0 : i32
    return %c0_i32, %c0_i32_0 : i32, i32
  }
  func.func @transform_4(%arg0: i32) -> (i32, i32) {
    %c0_i32 = arith.constant 0 : i32
    %c0_i32_0 = arith.constant 0 : i32
    %c0_i32_1 = arith.constant 0 : i32
    return %c0_i32, %c0_i32_0 : i32, i32
  }
  func.func @transform_5(%arg0: i32) -> (i32, i32) {
    %c0_i32 = arith.constant 0 : i32
    %c0_i32_0 = arith.constant 0 : i32
    %c0_i32_1 = arith.constant 0 : i32
    return %c0_i32, %c0_i32_0 : i32, i32
  }
  func.func @transform_6(%arg0: i32) -> (i32, i32, i32) {
    %c0_i32 = arith.constant 0 : i32
    %c0_i32_0 = arith.constant 0 : i32
    %c0_i32_1 = arith.constant 0 : i32
    return %arg0, %c0_i32, %c0_i32_0 : i32, i32, i32
  }
}

</mosaic_0001>

<llo_original>
// kernel: tpu_custom_call.1
$region0: #{tpu_custom_call.1}
  #allocation0 [shape = 'u32[]', space=smem, size = 0x4, offset = 0x4, fixed_abs, tag = 'smem constant byte address 0x4 - core index']
  #allocation1 [shape = 'u32[144,128]{1,0:T(1,128)}', space=vmem, size = 0x12000, scoped, tag = 'internal scratch']
  %s0 = inlined_call_operand.hbm [shape: f32[2,32,256], index: 0, kind: input, shape index: {}]
  %s1 = inlined_call_operand.hbm [shape: f32[2,1,256], index: 1, kind: input, shape index: {}]
  %s2 = inlined_call_operand.hbm [shape: f32[32,32], index: 2, kind: input, shape index: {}]
  %s3 = inlined_call_operand.vmem [shape: f32[1,32], index: 3, kind: input, shape index: {}]
  %s4 = inlined_call_operand.hbm [shape: f32[32,32], index: 4, kind: input, shape index: {}]
  %s5 = inlined_call_operand.vmem [shape: f32[1,32], index: 5, kind: input, shape index: {}]
  %s6 = inlined_call_operand.hbm [shape: f32[2,32,256], index: 6, kind: output, shape index: {}]
  %s7 = sld [smem:[#allocation0]]
  $region73: #{tpu_custom_call.1} parent=0
    _
  %s9 = ssub.s32 1, %s7
  %s10 = scalar_select 0, %s9, %s7
  $region1: #{tpu_custom_call.1} parent=0
    #allocation2 [shape = 'u8[65536]{0}', space=vmem, size = 0x10000, scoped, tag = 'input window, operand 0']
    #allocation3 [shape = 's32[2]{0}', space=sflag, size = 0x8, scoped, tag = 'scoped memory for tpu_custom_call.1']
    #allocation4 [shape = 's32[2]{0}', space=sflag, size = 0x8, scoped, tag = 'scoped memory for tpu_custom_call.1']
    #allocation5 [shape = 'u8[2048]{0}', space=vmem, size = 0x800, scoped, tag = 'input window, operand 1']
    #allocation6 [shape = 's32[2]{0}', space=sflag, size = 0x8, scoped, tag = 'scoped memory for tpu_custom_call.1']
    #allocation7 [shape = 'u8[16384]{0}', space=vmem, size = 0x4000, scoped, tag = 'input window, operand 2, single buffered']
    #allocation8 [shape = 'u8[16384]{0}', space=vmem, size = 0x4000, scoped, tag = 'input window, operand 4, single buffered']
    #allocation9 [shape = 's32[1]{0}', space=sflag, size = 0x4, scoped, tag = 'scoped memory for tpu_custom_call.1']
    #allocation10 [shape = 'u8[65536]{0}', space=vmem, size = 0x10000, scoped, tag = 'output window, operand 0']
    %11 = vsyncpa [#allocation3], 0
    %s12 = scalar_lea.sflag [#allocation3], 1
    %13 = vsyncpa %s12, 0
    %14 = vsyncpa [#allocation6], 0
    %s15 = scalar_lea.sflag [#allocation6], 1
    %16 = vsyncpa %s15, 0
    %17 = vsyncpa [#allocation9], 0
    %18 = vsyncpa [#allocation4], 0
    %s19 = scalar_lea.sflag [#allocation4], 1
    %20 = vsyncpa %s19, 0
    loop: start=0, step=1, limit=4
    $region2: #{tpu_custom_call.1} parent=1 // loop_pre_header
      _
    $region3: #{tpu_custom_call.1} parent=1 // loop_header
      %s22 = sphi 0, %s26
      %p23 = scmp.ge.s32.totalorder %s22, 4
      %s32 = sphi 0, %s34
      %s35 = sphi 0, %s32
      %s36 = sphi 0, %s35
      %s52 = sphi 0, %s36
      %s58 = sphi 0, %s60
      %s61 = sphi 0, %s58
      %s62 = sphi 0, %s61
      %s78 = sphi 0, %s62
      %s82 = sphi 0, %s82
      %s84 = sphi 0, %s82
      %s85 = sphi 0, %s84
      %s99 = sphi 0, %s85
      %s103 = sphi 0, %s103
      %s105 = sphi 0, %s103
      %s106 = sphi 0, %s105
      %s120 = sphi 0, %s106
      %s124 = sphi 0, %s124
      %s126 = sphi 0, %s124
      %s127 = sphi 0, %s126
      %s141 = sphi 0, %s127
      %s145 = sphi 0, %s145
      %s147 = sphi 0, %s145
      %s148 = sphi 0, %s147
      %s162 = sphi 0, %s148
      %s168 = sphi 0, %s170
      %s171 = sphi 0, %s168
      %s172 = sphi 0, %s171
      %s188 = sphi 0, %s172
    $region4: #{tpu_custom_call.1} parent=1 // loop_header_branch
      %25 = sbr.rel (%p23) target = $region8
    $region5: #{tpu_custom_call.1} parent=1 // loop_body
      %s27 = ssub.s32 %s22, 1
      %s28 = ssub.s32 %s22, 2
      %s29 = sadd.s32 %s22, 1
      %s30 = ssub.s32 %s22, %s29
      %p31 = scmp.eq.s32.totalorder %s30, 0
      %s33 = sadd.s32 %s32, 1
      %s34 = scalar_select %p31, %s32, %s33
      %p37 = pneg %p31
      %p38 = scmp.eq.s32.totalorder %s22, 1
      %p39 = por %p37, %p38
      %p40 = scmp.ne.s32.totalorder %s32, %s35
      %p41 = scmp.eq.s32.totalorder %s22, 0
      %p42 = por %p40, %p41
      %p43 = scmp.ne.s32.totalorder %s32, %s35
      %p44 = scmp.eq.s32.totalorder %s27, 1
      %p45 = por %p43, %p44
      %p46 = scmp.ne.s32.totalorder %s35, %s36
      %p47 = scmp.eq.s32.totalorder %s27, 0
      %p48 = por %p46, %p47
      %p49 = scmp.ne.s32.totalorder %s35, %s36
      %p50 = scmp.eq.s32.totalorder %s28, 1
      %p51 = por %p49, %p50
      %p53 = scmp.ne.s32.totalorder %s36, %s52
      %p54 = scmp.eq.s32.totalorder %s28, 0
      %p55 = por %p53, %p54
      %s56 = ssub.s32 %s22, %s29
      %p57 = scmp.eq.s32.totalorder %s56, 0
      %s59 = sadd.s32 %s58, 1
      %s60 = scalar_select %p57, %s58, %s59
      %p63 = pneg %p57
      %p64 = scmp.eq.s32.totalorder %s22, 1
      %p65 = por %p63, %p64
      %p66 = scmp.ne.s32.totalorder %s58, %s61
      %p67 = scmp.eq.s32.totalorder %s22, 0
      %p68 = por %p66, %p67
      %p69 = scmp.ne.s32.totalorder %s58, %s61
      %p70 = scmp.eq.s32.totalorder %s27, 1
      %p71 = por %p69, %p70
      %p72 = scmp.ne.s32.totalorder %s61, %s62
      %p73 = scmp.eq.s32.totalorder %s27, 0
      %p74 = por %p72, %p73
      %p75 = scmp.ne.s32.totalorder %s61, %s62
      %p76 = scmp.eq.s32.totalorder %s28, 1
      %p77 = por %p75, %p76
      %p79 = scmp.ne.s32.totalorder %s62, %s78
      %p80 = scmp.eq.s32.totalorder %s28, 0
      %p81 = por %p79, %p80
      %s83 = sadd.s32 %s82, 1
      %p86 = scmp.eq.s32.totalorder %s22, 1
      %p87 = scmp.ne.s32.totalorder %s82, %s84
      %p88 = scmp.eq.s32.totalorder %s22, 0
      %p89 = por %p87, %p88
      %p90 = scmp.ne.s32.totalorder %s82, %s84
      %p91 = scmp.eq.s32.totalorder %s27, 1
      %p92 = por %p90, %p91
      %p93 = scmp.ne.s32.totalorder %s84, %s85
      %p94 = scmp.eq.s32.totalorder %s27, 0
      %p95 = por %p93, %p94
      %p96 = scmp.ne.s32.totalorder %s84, %s85
      %p97 = scmp.eq.s32.totalorder %s28, 1
      %p98 = por %p96, %p97
      %p100 = scmp.ne.s32.totalorder %s85, %s99
      %p101 = scmp.eq.s32.totalorder %s28, 0
      %p102 = por %p100, %p101
      %s104 = sadd.s32 %s103, 1
      %p107 = scmp.eq.s32.totalorder %s22, 1
      %p108 = scmp.ne.s32.totalorder %s103, %s105
      %p109 = scmp.eq.s32.totalorder %s22, 0
      %p110 = por %p108, %p109
      %p111 = scmp.ne.s32.totalorder %s103, %s105
      %p112 = scmp.eq.s32.totalorder %s27, 1
      %p113 = por %p111, %p112
      %p114 = scmp.ne.s32.totalorder %s105, %s106
      %p115 = scmp.eq.s32.totalorder %s27, 0
      %p116 = por %p114, %p115
      %p117 = scmp.ne.s32.totalorder %s105, %s106
      %p118 = scmp.eq.s32.totalorder %s28, 1
      %p119 = por %p117, %p118
      %p121 = scmp.ne.s32.totalorder %s106, %s120
      %p122 = scmp.eq.s32.totalorder %s28, 0
      %p123 = por %p121, %p122
      %s125 = sadd.s32 %s124, 1
      %p128 = scmp.eq.s32.totalorder %s22, 1
      %p129 = scmp.ne.s32.totalorder %s124, %s126
      %p130 = scmp.eq.s32.totalorder %s22, 0
      %p131 = por %p129, %p130
      %p132 = scmp.ne.s32.totalorder %s124, %s126
      %p133 = scmp.eq.s32.totalorder %s27, 1
      %p134 = por %p132, %p133
      %p135 = scmp.ne.s32.totalorder %s126, %s127
      %p136 = scmp.eq.s32.totalorder %s27, 0
      %p137 = por %p135, %p136
      %p138 = scmp.ne.s32.totalorder %s126, %s127
      %p139 = scmp.eq.s32.totalorder %s28, 1
      %p140 = por %p138, %p139
      %p142 = scmp.ne.s32.totalorder %s127, %s141
      %p143 = scmp.eq.s32.totalorder %s28, 0
      %p144 = por %p142, %p143
      %s146 = sadd.s32 %s145, 1
      %p149 = scmp.eq.s32.totalorder %s22, 1
      %p150 = scmp.ne.s32.totalorder %s145, %s147
      %p151 = scmp.eq.s32.totalorder %s22, 0
      %p152 = por %p150, %p151
      %p153 = scmp.ne.s32.totalorder %s145, %s147
      %p154 = scmp.eq.s32.totalorder %s27, 1
      %p155 = por %p153, %p154
      %p156 = scmp.ne.s32.totalorder %s147, %s148
      %p157 = scmp.eq.s32.totalorder %s27, 0
      %p158 = por %p156, %p157
      %p159 = scmp.ne.s32.totalorder %s147, %s148
      %p160 = scmp.eq.s32.totalorder %s28, 1
      %p161 = por %p159, %p160
      %p163 = scmp.ne.s32.totalorder %s148, %s162
      %p164 = scmp.eq.s32.totalorder %s28, 0
      %p165 = por %p163, %p164
      %s166 = ssub.s32 %s22, %s29
      %p167 = scmp.eq.s32.totalorder %s166, 0
      %s169 = sadd.s32 %s168, 1
      %s170 = scalar_select %p167, %s168, %s169
      %p173 = pneg %p167
      %p174 = scmp.eq.s32.totalorder %s22, 1
      %p175 = por %p173, %p174
      %p176 = scmp.ne.s32.totalorder %s168, %s171
      %p177 = scmp.eq.s32.totalorder %s22, 0
      %p178 = por %p176, %p177
      %p179 = scmp.ne.s32.totalorder %s168, %s171
      %p180 = scmp.eq.s32.totalorder %s27, 1
      %p181 = por %p179, %p180
      %p182 = scmp.ne.s32.totalorder %s171, %s172
      %p183 = scmp.eq.s32.totalorder %s27, 0
      %p184 = por %p182, %p183
      %p185 = scmp.ne.s32.totalorder %s171, %s172
      %p186 = scmp.eq.s32.totalorder %s28, 1
      %p187 = por %p185, %p186
      %p189 = scmp.ne.s32.totalorder %s172, %s188
      %p190 = scmp.eq.s32.totalorder %s28, 0
      %p191 = por %p189, %p190
      %p192 = scmp.le.s32.totalorder 1, %s22
      %p193 = scmp.lt.s32.totalorder %s22, 3
      %p194 = pnand %p192, %p193
      %p195 = pneg %p194
      // Predicated region
      $region9: #{tpu_custom_call.1} parent=5 // pred_check
        _
      $region10: #{tpu_custom_call.1} parent=5 // pred_check_branch
        %197 = sbr.rel (%p194) target = $region12
      $region11: #{tpu_custom_call.1} parent=5 // pred_region
        %s198 = ssub.s32 %s22, 1
        // Predicated region
        $region13: #{tpu_custom_call.1} parent=11 // pred_check
          %p199 = pneg %p95
        $region14: #{tpu_custom_call.1} parent=11 // pred_check_branch
          %201 = sbr.rel (%p199) target = $region16
        $region15: #{tpu_custom_call.1} parent=11 // pred_region
          %s203 = ssub.s32 512, 512
          %204 = vsyncadd [#allocation6], %s203
          %s205 = sshll.u32 [#allocation7], 4
          %s206 = int_to_ptr.vmem [resolvable:$true] %s205
          %211 = dma.hbm_to_vmem [thread:$0]  %s2, 512, %s206, [#allocation6], 128, 128, 8
        $region16: #{tpu_custom_call.1} parent=11 // pred_fallthru
          _
        // Predicated region
        $region17: #{tpu_custom_call.1} parent=11 // pred_check
          %p212 = pneg %p116
        $region18: #{tpu_custom_call.1} parent=11 // pred_check_branch
          %214 = sbr.rel (%p212) target = $region20
        $region19: #{tpu_custom_call.1} parent=11 // pred_region
          _
        $region20: #{tpu_custom_call.1} parent=11 // pred_fallthru
          _
        // Predicated region
        $region21: #{tpu_custom_call.1} parent=11 // pred_check
          %p215 = pneg %p137
        $region22: #{tpu_custom_call.1} parent=11 // pred_check_branch
          %217 = sbr.rel (%p215) target = $region24
        $region23: #{tpu_custom_call.1} parent=11 // pred_region
          %s219 = ssub.s32 512, 512
          %220 = vsyncadd [#allocation9], %s219
          %s221 = sshll.u32 [#allocation8], 4
          %s222 = int_to_ptr.vmem [resolvable:$true] %s221
          %227 = dma.hbm_to_vmem [thread:$0]  %s4, 512, %s222, [#allocation9], 128, 128, 8
        $region24: #{tpu_custom_call.1} parent=11 // pred_fallthru
          _
        // Predicated region
        $region25: #{tpu_custom_call.1} parent=11 // pred_check
          %p228 = pneg %p158
        $region26: #{tpu_custom_call.1} parent=11 // pred_check_branch
          %230 = sbr.rel (%p228) target = $region28
        $region27: #{tpu_custom_call.1} parent=11 // pred_region
          _
        $region28: #{tpu_custom_call.1} parent=11 // pred_fallthru
          _
      $region12: #{tpu_custom_call.1} parent=5 // pred_fallthru
        _
      %p231 = scmp.lt.s32.totalorder %s22, 2
      // Predicated region
      $region29: #{tpu_custom_call.1} parent=5 // pred_check
        %p232 = pneg %p231
      $region30: #{tpu_custom_call.1} parent=5 // pred_check_branch
        %234 = sbr.rel (%p232) target = $region32
      $region31: #{tpu_custom_call.1} parent=5 // pred_region
        // Predicated region
        $region33: #{tpu_custom_call.1} parent=31 // pred_check
          %p235 = pneg %p42
        $region34: #{tpu_custom_call.1} parent=31 // pred_check_branch
          %237 = sbr.rel (%p235) target = $region36
        $region35: #{tpu_custom_call.1} parent=31 // pred_region
          %s238 = sand.u32 %s32, 1
          %s239 = scalar_lea.sflag [#allocation3], %s238
          %s240 = sand.u32 %s32, 1
          %s241 = smul.addr %s240, 64
          %s242 = scalar_lea.vmem [#allocation2], %s241
          %s244 = ssub.s32 1024, 1024
          %245 = vsyncadd %s239, %s244
          %s246 = smul.addr %s22, 8
          %s247 = smul.addr %s246, 128
          %s248 = scalar_lea.hbm %s0, %s247
          %s249 = sshll.u32 %s242, 4
          %s250 = int_to_ptr.vmem [resolvable:$true] %s249
          %255 = dma.hbm_to_vmem [thread:$0]  %s248, 1024, %s250, %s239, 256, 256, 16
        $region36: #{tpu_custom_call.1} parent=31 // pred_fallthru
          _
        // Predicated region
        $region37: #{tpu_custom_call.1} parent=31 // pred_check
          %p256 = pneg %p68
        $region38: #{tpu_custom_call.1} parent=31 // pred_check_branch
          %258 = sbr.rel (%p256) target = $region40
        $region39: #{tpu_custom_call.1} parent=31 // pred_region
          %s259 = sand.u32 %s22, 1
          %s260 = scalar_lea.sflag [#allocation6], %s259
          %s261 = sand.u32 %s58, 1
          %s262 = smul.addr %s261, 2
          %s263 = scalar_lea.vmem [#allocation5], %s262
          %s265 = ssub.s32 32, 32
          %266 = vsyncadd %s260, %s265
          %s267 = smul.addr %s22, 2
          %s268 = smul.addr %s267, 16
          %s269 = scalar_lea.hbm %s1, %s268
          %s271 = sshll.u32 %s263, 4
          %s272 = int_to_ptr.vmem [resolvable:$true] %s271
          %274 = dma.hbm_to_vmem [thread:$0]  %s269, 32, %s272, %s260
        $region40: #{tpu_custom_call.1} parent=31 // pred_fallthru
          _
      $region32: #{tpu_custom_call.1} parent=5 // pred_fallthru
        _
      %p275 = scmp.le.s32.totalorder 1, %s22
      %p276 = scmp.lt.s32.totalorder %s22, 3
      %p277 = pnand %p275, %p276
      %p278 = pneg %p277
      // Predicated region
      $region41: #{tpu_custom_call.1} parent=5 // pred_check
        _
      $region42: #{tpu_custom_call.1} parent=5 // pred_check_branch
        %280 = sbr.rel (%p277) target = $region44
      $region43: #{tpu_custom_call.1} parent=5 // pred_region
        %s281 = ssub.s32 %s22, 1
        %s282 = sand.u32 %s35, 1
        %s283 = scalar_lea.sflag [#allocation3], %s282
        %s284 = sand.u32 %s35, 1
        %s285 = smul.addr %s284, 64
        %s286 = scalar_lea.vmem [#allocation2], %s285
        // Predicated region
        $region45: #{tpu_custom_call.1} parent=43 // pred_check
          %p287 = pneg %p48
        $region46: #{tpu_custom_call.1} parent=43 // pred_check_branch
          %289 = sbr.rel (%p287) target = $region48
        $region47: #{tpu_custom_call.1} parent=43 // pred_region
          %290 = dma.done %s283, 1024
        $region48: #{tpu_custom_call.1} parent=43 // pred_fallthru
          _
        %s291 = sand.u32 %s27, 1
        %s292 = scalar_lea.sflag [#allocation6], %s291
        %s293 = sand.u32 %s61, 1
        %s294 = smul.addr %s293, 2
        %s295 = scalar_lea.vmem [#allocation5], %s294
        // Predicated region
        $region49: #{tpu_custom_call.1} parent=43 // pred_check
          %p296 = pneg %p74
        $region50: #{tpu_custom_call.1} parent=43 // pred_check_branch
          %298 = sbr.rel (%p296) target = $region52
        $region51: #{tpu_custom_call.1} parent=43 // pred_region
          %299 = dma.done %s292, 32
        $region52: #{tpu_custom_call.1} parent=43 // pred_fallthru
          _
        // Predicated region
        $region53: #{tpu_custom_call.1} parent=43 // pred_check
          %p300 = pneg %p95
        $region54: #{tpu_custom_call.1} parent=43 // pred_check_branch
          %302 = sbr.rel (%p300) target = $region56
        $region55: #{tpu_custom_call.1} parent=43 // pred_region
          %303 = dma.done [#allocation6], 512
        $region56: #{tpu_custom_call.1} parent=43 // pred_fallthru
          _
        // Predicated region
        $region57: #{tpu_custom_call.1} parent=43 // pred_check
          %p304 = pneg %p137
        $region58: #{tpu_custom_call.1} parent=43 // pred_check_branch
          %306 = sbr.rel (%p304) target = $region60
        $region59: #{tpu_custom_call.1} parent=43 // pred_region
          %307 = dma.done [#allocation9], 512
        $region60: #{tpu_custom_call.1} parent=43 // pred_fallthru
          _
        %s308 = sand.u32 %s35, 1
        %s309 = scalar_lea.sflag [#allocation3], %s308
        %s310 = sand.u32 %s35, 1
        %s311 = smul.addr %s310, 64
        %s312 = scalar_lea.vmem [#allocation2], %s311
        %p313 = pneg %p48
        %p314 = pneg %p45
        %s315 = sand.u32 %s27, 1
        %s316 = scalar_lea.sflag [#allocation6], %s315
        %s317 = sand.u32 %s61, 1
        %s318 = smul.addr %s317, 2
        %s319 = scalar_lea.vmem [#allocation5], %s318
        %p320 = pneg %p74
        %p321 = pneg %p71
        %p322 = pneg %p95
        %p323 = pneg %p92
        %p324 = pneg %p116
        %p325 = pneg %p113
        %p326 = pneg %p137
        %p327 = pneg %p134
        %p328 = pneg %p158
        %p329 = pneg %p155
        %p330 = pneg %p184
        %p331 = pneg %p181
        %s332 = sand.u32 %s171, 1
        %s333 = scalar_lea.sflag [#allocation4], %s332
        %s334 = sand.u32 %s171, 1
        %s335 = smul.addr %s334, 64
        %s336 = scalar_lea.vmem [#allocation10], %s335
        %v337 = vld [vmem:[%s286] sm:$0xff]
        %v338 = vld [vmem:[%s286 + $0x8] sm:$0xff]
        %v339 = vld [vmem:[%s286 + $0x10] sm:$0xff]
        %v340 = vld [vmem:[%s286 + $0x18] sm:$0xff]
        %v341 = vld [vmem:[%s286 + $0x20] sm:$0xff]
        %v342 = vld [vmem:[%s286 + $0x28] sm:$0xff]
        %v343 = vld [vmem:[%s286 + $0x30] sm:$0xff]
        %v344 = vld [vmem:[%s286 + $0x38] sm:$0xff]
        %v345 = vld [vmem:[%s295] sm:$0x3]
        %v347 = vlaneseq
        %v348 = vshrl.u32 %v347, 7
        %v349 = vsub.s32 0, %v348
        %v350 = vrot.slane %v345, %v349
        %v351 = vlaneseq
        %v352 = vshrl.u32 %v351, 7
        %v353 = vsub.s32 1, %v352
        %v354 = vrot.slane %v345, %v353
        %357 = vmatprep.subr.mxu0 %v338
        %358 = vmatpush1.xpose.msra.mxu0 %v337
        %359 = vmatprep.subr.mxu0 %v340
        %360 = vmatpush1.xpose.msra.mxu0 %v339
        %361 = vmatprep.subr.mxu0 %v342
        %362 = vmatpush1.xpose.msra.mxu0 %v341
        %363 = vmatprep.subr.mxu0 %v344
        %364 = vmatpush1.xpose.msra.mxu0 %v343
        %365 = vmatprep.subr.mxu0 0.0
        %366 = vmatpush1.xpose.msra.mxu0 0.0
        %367 = vmatprep.subr.mxu0 0.0
        %368 = vmatpush1.xpose.msra.mxu0 0.0
        %369 = vmatprep.subr.mxu0 0.0
        %370 = vmatpush1.xpose.msra.mxu0 0.0
        %371 = vmatprep.subr.mxu0 0.0
        %372 = vmatpush1.xpose.msra.mxu0 0.0
        %373 = vmatprep.subr.mxu0 0.0
        %374 = vmatpush1.xpose.msra.mxu0 0.0
        %375 = vmatprep.subr.mxu0 0.0
        %376 = vmatpush1.xpose.msra.mxu0 0.0
        %377 = vmatprep.subr.mxu0 0.0
        %378 = vmatpush1.xpose.msra.mxu0 0.0
        %379 = vmatprep.subr.mxu0 0.0
        %380 = vmatpush1.xpose.msra.mxu0 0.0
        %381 = vmatprep.subr.mxu0 0.0
        %382 = vmatpush1.xpose.msra.mxu0 0.0
        %383 = vmatprep.subr.mxu0 0.0
        %384 = vmatpush1.xpose.msra.mxu0 0.0
        %385 = vmatprep.subr.mxu0 0.0
        %386 = vmatpush1.xpose.msra.mxu0 0.0
        %387 = vmatprep.subr.mxu0 0.0
        %388 = vmatpush1.xpose.msra.mxu0 0.0
        %389 = vmatprep.subr.mxu0 0.0
        %390 = vmatpush1.xpose.msra.mxu0 0.0
        %391 = vmatprep.subr.mxu0 0.0
        %392 = vmatpush1.xpose.msra.mxu0 0.0
        %393 = vmatprep.subr.mxu0 0.0
        %394 = vmatpush1.xpose.msra.mxu0 0.0
        %395 = vmatprep.subr.mxu0 0.0
        %396 = vmatpush1.xpose.msra.mxu0 0.0
        %397 = vmatprep.subr.mxu0 0.0
        %398 = vmatpush1.xpose.msra.mxu0 0.0
        %399 = vmatprep.subr.mxu0 0.0
        %400 = vmatpush1.xpose.msra.mxu0 0.0
        %401 = vmatprep.subr.mxu0 0.0
        %402 = vmatpush1.xpose.msra.mxu0 0.0
        %403 = vmatprep.subr.mxu0 0.0
        %404 = vmatpush1.xpose.msra.mxu0 0.0
        %405 = vmatprep.subr.mxu0 0.0
        %406 = vmatpush1.xpose.msra.mxu0 0.0
        %407 = vmatprep.subr.mxu0 0.0
        %408 = vmatpush1.xpose.msra.mxu0 0.0
        %409 = vmatprep.subr.mxu0 0.0
        %410 = vmatpush1.xpose.msra.mxu0 0.0
        %411 = vmatprep.subr.mxu0 0.0
        %412 = vmatpush1.xpose.msra.mxu0 0.0
        %413 = vmatprep.subr.mxu0 0.0
        %414 = vmatpush1.xpose.msra.mxu0 0.0
        %415 = vmatprep.subr.mxu0 0.0
        %416 = vmatpush1.xpose.msra.mxu0 0.0
        %417 = vmatprep.subr.mxu0 0.0
        %418 = vmatpush1.xpose.msra.mxu0 0.0
        %419 = vmatprep.subr.mxu0 0.0
        %420 = vmatpush1.xpose.msra.mxu0 0.0
        %421 = vmatprep.mubr.f32.mxu0 %v354
        %422 = vmatmul.mubr.f32.gmra.mrb[0].mxu0 %v350
        %v423 = vpop.f32.mrb[0].mxu0
        %v424 = vadd.f32 0.0, %v423
        %v425 = vpop.f32.mrb[0].mxu0
        %426 = vdwg.mxu0
        %v427 = vmul.f32 %v424, 0.00390625
        %v428 = vld [vmem:[#allocation7] sm:$0xff]
        %v429 = vld [vmem:[#allocation7 + $0x8] sm:$0xff]
        %v430 = vld [vmem:[#allocation7 + $0x10] sm:$0xff]
        %v431 = vld [vmem:[#allocation7 + $0x18] sm:$0xff]
        %v432 = vld [vmem:[%s3] sm:$0x1]
        %vm433 = vcmask 261120
        %v435 = vsel %vm433, %v427, 0
        %437 = vmatprep.subr.mxu0 0.0
        %438 = vmatpush1.msra.mxu0 %v428
        %439 = vmatprep.subr.mxu0 0.0
        %440 = vmatpush1.msra.mxu0 %v429
        %441 = vmatprep.subr.mxu0 0.0
        %442 = vmatpush1.msra.mxu0 %v430
        %443 = vmatprep.subr.mxu0 0.0
        %444 = vmatpush1.msra.mxu0 %v431
        %445 = vmatprep.subr.mxu0 0.0
        %446 = vmatpush1.msra.mxu0 0.0
        %447 = vmatprep.subr.mxu0 0.0
        %448 = vmatpush1.msra.mxu0 0.0
        %449 = vmatprep.subr.mxu0 0.0
        %450 = vmatpush1.msra.mxu0 0.0
        %451 = vmatprep.subr.mxu0 0.0
        %452 = vmatpush1.msra.mxu0 0.0
        %453 = vmatprep.subr.mxu0 0.0
        %454 = vmatpush1.msra.mxu0 0.0
        %455 = vmatprep.subr.mxu0 0.0
        %456 = vmatpush1.msra.mxu0 0.0
        %457 = vmatprep.subr.mxu0 0.0
        %458 = vmatpush1.msra.mxu0 0.0
        %459 = vmatprep.subr.mxu0 0.0
        %460 = vmatpush1.msra.mxu0 0.0
        %461 = vmatprep.subr.mxu0 0.0
        %462 = vmatpush1.msra.mxu0 0.0
        %463 = vmatprep.subr.mxu0 0.0
        %464 = vmatpush1.msra.mxu0 0.0
        %465 = vmatprep.subr.mxu0 0.0
        %466 = vmatpush1.msra.mxu0 0.0
        %467 = vmatprep.subr.mxu0 0.0
        %468 = vmatpush1.msra.mxu0 0.0
        %469 = vmatprep.subr.mxu0 0.0
        %470 = vmatpush1.msra.mxu0 0.0
        %471 = vmatprep.subr.mxu0 0.0
        %472 = vmatpush1.msra.mxu0 0.0
        %473 = vmatprep.subr.mxu0 0.0
        %474 = vmatpush1.msra.mxu0 0.0
        %475 = vmatprep.subr.mxu0 0.0
        %476 = vmatpush1.msra.mxu0 0.0
        %477 = vmatprep.subr.mxu0 0.0
        %478 = vmatpush1.msra.mxu0 0.0
        %479 = vmatprep.subr.mxu0 0.0
        %480 = vmatpush1.msra.mxu0 0.0
        %481 = vmatprep.subr.mxu0 0.0
        %482 = vmatpush1.msra.mxu0 0.0
        %483 = vmatprep.subr.mxu0 0.0
        %484 = vmatpush1.msra.mxu0 0.0
        %485 = vmatprep.subr.mxu0 0.0
        %486 = vmatpush1.msra.mxu0 0.0
        %487 = vmatprep.subr.mxu0 0.0
        %488 = vmatpush1.msra.mxu0 0.0
        %489 = vmatprep.subr.mxu0 0.0
        %490 = vmatpush1.msra.mxu0 0.0
        %491 = vmatprep.subr.mxu0 0.0
        %492 = vmatpush1.msra.mxu0 0.0
        %493 = vmatprep.subr.mxu0 0.0
        %494 = vmatpush1.msra.mxu0 0.0
        %495 = vmatprep.subr.mxu0 0.0
        %496 = vmatpush1.msra.mxu0 0.0
        %497 = vmatprep.subr.mxu0 0.0
        %498 = vmatpush1.msra.mxu0 0.0
        %499 = vmatprep.subr.mxu0 0.0
        %500 = vmatpush1.msra.mxu0 0.0
        %501 = vmatprep.mubr.f32.mxu0 0.0
        %502 = vmatmul.mubr.f32.gmra.mrb[0].mxu0 %v435
        %v503 = vpop.f32.mrb[0].mxu0
        %v504 = vadd.f32 %v432, %v503
        %v505 = vpop.f32.mrb[0].mxu0
        %506 = vdwg.mxu0
        %v507 = vmax.f32 %v504, 0.0
        %v508 = vld [vmem:[#allocation8] sm:$0xff]
        %v509 = vld [vmem:[#allocation8 + $0x8] sm:$0xff]
        %v510 = vld [vmem:[#allocation8 + $0x10] sm:$0xff]
        %v511 = vld [vmem:[#allocation8 + $0x18] sm:$0xff]
        %v512 = vld [vmem:[%s5] sm:$0x1]
        %v514 = vsel %vm433, %v507, 0
        %516 = vmatprep.subr.mxu0 0.0
        %517 = vmatpush1.msra.mxu0 %v508
        %518 = vmatprep.subr.mxu0 0.0
        %519 = vmatpush1.msra.mxu0 %v509
        %520 = vmatprep.subr.mxu0 0.0
        %521 = vmatpush1.msra.mxu0 %v510
        %522 = vmatprep.subr.mxu0 0.0
        %523 = vmatpush1.msra.mxu0 %v511
        %524 = vmatprep.subr.mxu0 0.0
        %525 = vmatpush1.msra.mxu0 0.0
        %526 = vmatprep.subr.mxu0 0.0
        %527 = vmatpush1.msra.mxu0 0.0
        %528 = vmatprep.subr.mxu0 0.0
        %529 = vmatpush1.msra.mxu0 0.0
        %530 = vmatprep.subr.mxu0 0.0
        %531 = vmatpush1.msra.mxu0 0.0
        %532 = vmatprep.subr.mxu0 0.0
        %533 = vmatpush1.msra.mxu0 0.0
        %534 = vmatprep.subr.mxu0 0.0
        %535 = vmatpush1.msra.mxu0 0.0
        %536 = vmatprep.subr.mxu0 0.0
        %537 = vmatpush1.msra.mxu0 0.0
        %538 = vmatprep.subr.mxu0 0.0
        %539 = vmatpush1.msra.mxu0 0.0
        %540 = vmatprep.subr.mxu0 0.0
        %541 = vmatpush1.msra.mxu0 0.0
        %542 = vmatprep.subr.mxu0 0.0
        %543 = vmatpush1.msra.mxu0 0.0
        %544 = vmatprep.subr.mxu0 0.0
        %545 = vmatpush1.msra.mxu0 0.0
        %546 = vmatprep.subr.mxu0 0.0
        %547 = vmatpush1.msra.mxu0 0.0
        %548 = vmatprep.subr.mxu0 0.0
        %549 = vmatpush1.msra.mxu0 0.0
        %550 = vmatprep.subr.mxu0 0.0
        %551 = vmatpush1.msra.mxu0 0.0
        %552 = vmatprep.subr.mxu0 0.0
        %553 = vmatpush1.msra.mxu0 0.0
        %554 = vmatprep.subr.mxu0 0.0
        %555 = vmatpush1.msra.mxu0 0.0
        %556 = vmatprep.subr.mxu0 0.0
        %557 = vmatpush1.msra.mxu0 0.0
        %558 = vmatprep.subr.mxu0 0.0
        %559 = vmatpush1.msra.mxu0 0.0
        %560 = vmatprep.subr.mxu0 0.0
        %561 = vmatpush1.msra.mxu0 0.0
        %562 = vmatprep.subr.mxu0 0.0
        %563 = vmatpush1.msra.mxu0 0.0
        %564 = vmatprep.subr.mxu0 0.0
        %565 = vmatpush1.msra.mxu0 0.0
        %566 = vmatprep.subr.mxu0 0.0
        %567 = vmatpush1.msra.mxu0 0.0
        %568 = vmatprep.subr.mxu0 0.0
        %569 = vmatpush1.msra.mxu0 0.0
        %570 = vmatprep.subr.mxu0 0.0
        %571 = vmatpush1.msra.mxu0 0.0
        %572 = vmatprep.subr.mxu0 0.0
        %573 = vmatpush1.msra.mxu0 0.0
        %574 = vmatprep.subr.mxu0 0.0
        %575 = vmatpush1.msra.mxu0 0.0
        %576 = vmatprep.subr.mxu0 0.0
        %577 = vmatpush1.msra.mxu0 0.0
        %578 = vmatprep.subr.mxu0 0.0
        %579 = vmatpush1.msra.mxu0 0.0
        %580 = vmatprep.mubr.f32.mxu0 0.0
        %581 = vmatmul.mubr.f32.gmra.mrb[0].mxu0 %v514
        %v582 = vpop.f32.mrb[0].mxu0
        %v583 = vadd.f32 %v512, %v582
        %v584 = vpop.f32.mrb[0].mxu0
        %585 = vdwg.mxu0
        %v586 = vxor.u32 %v583, 2147483648
        %v587 = vmul.f32 %v586, 1.442695
        %v588 = vpow.pop %v587
        %v589 = vadd.f32 %v588, 1.0
        %v590 = vrcp.pop %v589
        %v591 = vmul.f32 1.0, %v590
        %v592 = vlaneseq
        %v593 = vshrl.u32 %v592, 7
        %v594 = vsub.s32 0, %v593
        %v595 = vrot.slane %v591, %v594
        %597 = vbcast.lane.b32.xlu0 %v595, 256
        %v598 = vpop.permute.xlu0 %597
        %s600 = sor.u32 256, 8
        %601 = vbcast.lane.b32.xlu0 %v595, %s600
        %v602 = vpop.permute.xlu0 %601
        %s604 = sor.u32 256, 16
        %605 = vbcast.lane.b32.xlu0 %v595, %s604
        %v606 = vpop.permute.xlu0 %605
        %s608 = sor.u32 256, 24
        %609 = vbcast.lane.b32.xlu0 %v595, %s608
        %v610 = vpop.permute.xlu0 %609
        %v611 = vmul.f32 %v337, %v598
        %v612 = vmul.f32 %v338, %v598
        %v613 = vmul.f32 %v339, %v602
        %v614 = vmul.f32 %v340, %v602
        %v615 = vmul.f32 %v341, %v606
        %v616 = vmul.f32 %v342, %v606
        %v617 = vmul.f32 %v343, %v610
        %v618 = vmul.f32 %v344, %v610
        %619 = vst [vmem:[%s336] sm:$0xff] %v611
        %620 = vst [vmem:[%s336 + $0x8] sm:$0xff] %v612
        %621 = vst [vmem:[%s336 + $0x10] sm:$0xff] %v613
        %622 = vst [vmem:[%s336 + $0x18] sm:$0xff] %v614
        %623 = vst [vmem:[%s336 + $0x20] sm:$0xff] %v615
        %624 = vst [vmem:[%s336 + $0x28] sm:$0xff] %v616
        %625 = vst [vmem:[%s336 + $0x30] sm:$0xff] %v617
        %626 = vst [vmem:[%s336 + $0x38] sm:$0xff] %v618
        %s627 = sand.u32 %s171, 1
        %s628 = scalar_lea.sflag [#allocation4], %s627
        %s629 = sand.u32 %s171, 1
        %s630 = smul.addr %s629, 64
        %s631 = scalar_lea.vmem [#allocation10], %s630
        // Predicated region
        $region61: #{tpu_custom_call.1} parent=43 // pred_check
          %p632 = pneg %p181
        $region62: #{tpu_custom_call.1} parent=43 // pred_check_branch
          %634 = sbr.rel (%p632) target = $region64
        $region63: #{tpu_custom_call.1} parent=43 // pred_region
          %s636 = ssub.s32 1024, 1024
          %637 = vsyncadd %s628, %s636
          %s638 = smul.addr %s27, 8
          %s639 = smul.addr %s638, 128
          %s640 = scalar_lea.hbm %s6, %s639
          %s641 = sshll.u32 %s631, 4
          %s642 = int_to_ptr.vmem [resolvable:$true] %s641
          %647 = dma.vmem_to_hbm [thread:$0]  %s642, 1024, %s640, %s628, 256, 256, 16
        $region64: #{tpu_custom_call.1} parent=43 // pred_fallthru
          _
      $region44: #{tpu_custom_call.1} parent=5 // pred_fallthru
        _
      %p648 = scmp.le.s32.totalorder 2, %s22
      // Predicated region
      $region65: #{tpu_custom_call.1} parent=5 // pred_check
        %p649 = pneg %p648
      $region66: #{tpu_custom_call.1} parent=5 // pred_check_branch
        %651 = sbr.rel (%p649) target = $region68
      $region67: #{tpu_custom_call.1} parent=5 // pred_region
        %s652 = ssub.s32 %s22, 2
        // Predicated region
        $region69: #{tpu_custom_call.1} parent=67 // pred_check
          %p653 = pneg %p187
        $region70: #{tpu_custom_call.1} parent=67 // pred_check_branch
          %655 = sbr.rel (%p653) target = $region72
        $region71: #{tpu_custom_call.1} parent=67 // pred_region
          %s656 = sand.u32 %s172, 1
          %s657 = scalar_lea.sflag [#allocation4], %s656
          %s658 = sand.u32 %s172, 1
          %s659 = smul.addr %s658, 64
          %s660 = scalar_lea.vmem [#allocation10], %s659
          %661 = dma.done %s657, 1024
        $region72: #{tpu_custom_call.1} parent=67 // pred_fallthru
          _
      $region68: #{tpu_custom_call.1} parent=5 // pred_fallthru
        _
    $region6: #{tpu_custom_call.1} parent=1 // loop_footer
      %s26 = sadd.s32 1, %s22
    $region7: #{tpu_custom_call.1} parent=1 // loop_footer_branch
      %21 = sbr.rel target = $region3
    $region8: #{tpu_custom_call.1} parent=1 // loop_exit
      _
    %662 = vsyncpa [#allocation3], 1
    %s663 = scalar_lea.sflag [#allocation3], 1
    %664 = vsyncpa %s663, 1
    %665 = vsyncpa [#allocation6], 1
    %s666 = scalar_lea.sflag [#allocation6], 1
    %667 = vsyncpa %s666, 1
    %668 = vsyncpa [#allocation9], 1
    %669 = vsyncpa [#allocation4], 1
    %s670 = scalar_lea.sflag [#allocation4], 1
    %671 = vsyncpa %s670, 1

</llo_original>
